<compile_context>
chip_gen: v5e
topology: v5e:2x2
jax: 0.10.0
libtpu: 0.0.40
codegen_flags: <defaults>
</compile_context>

<pallas_src>
import functools
import math

import jax
import jax.numpy as jnp
from jax.experimental import pallas as pl
from jax.experimental.pallas import tpu as pltpu


# ----------------------------------------------------------------------------- #
# Tiled linear kernel: o = x @ w + b
# ----------------------------------------------------------------------------- #
def linear_kernel(x_ref, w_ref, b_ref, o_ref):
    o_ref[...] = (
        jnp.dot(x_ref[...], w_ref[...], preferred_element_type=jnp.float32)
        + b_ref[...]
    ).astype(o_ref.dtype)


def linear_pallas(x, w, b, *, block_m=256):
    """x: (M, K), w: (K, N), b: (N,) -> (M, N), tiled over M with resident W."""
    M, K = x.shape
    N = w.shape[1]
    bm = M if M <= block_m else block_m
    n_m = pl.cdiv(M, bm)
    pad = n_m * bm - M
    if pad:
        x = jnp.pad(x, ((0, pad), (0, 0)))
    out = pl.pallas_call(
        linear_kernel,
        out_shape=jax.ShapeDtypeStruct((n_m * bm, N), jnp.float32),
        grid=(n_m,),
        in_specs=[
            pl.BlockSpec((bm, K), lambda i: (i, 0)),
            pl.BlockSpec((K, N), lambda i: (0, 0)),   # weight stays resident
            pl.BlockSpec((1, N), lambda i: (0, 0)),   # bias stays resident
        ],
        out_specs=pl.BlockSpec((bm, N), lambda i: (i, 0)),
        compiler_params=pltpu.CompilerParams(
            dimension_semantics=("parallel",),
            vmem_limit_bytes=32 * 1024 * 1024),
    )(x, w, b.reshape(1, N))
    return out[:M] if pad else out


# ----------------------------------------------------------------------------- #
# Deformable-attention core kernel
# ----------------------------------------------------------------------------- #
def deform_core_kernel(value_ref, attn_ref, locx_ref, locy_ref, out_ref,
                       *, spatial_shapes, num_points, hw_chunk):
    """One (batch, head, q_tile) block.

    value_ref : (1, 1, c, Len_v)  flattened multi-level value for this head
    attn_ref  : (1, 1, L*P, tq)   softmaxed attention weights (tq on lanes)
    locx_ref  : (1, 1, L*P, tq)   sampling x locations in [0, 1] (width axis)
    locy_ref  : (1, 1, L*P, tq)   sampling y locations in [0, 1] (height axis)
    out_ref   : (1, 1, c, tq)
    """
    P = num_points
    value = value_ref[0, 0]            # (c, Len_v)
    attn = attn_ref[0, 0]              # (L*P, tq)
    locx = locx_ref[0, 0]
    locy = locy_ref[0, 0]
    c = value.shape[0]
    tq = attn.shape[1]

    acc = jnp.zeros((c, tq), jnp.float32)
    offset = 0
    for lvl, (H, W) in enumerate(spatial_shapes):
        HW = H * W
        a = attn[lvl * P:(lvl + 1) * P, :]                      # (P, tq)
        # grid_sample(align_corners=False): pixel = loc * size - 0.5
        ix = locx[lvl * P:(lvl + 1) * P, :] * W - 0.5
        iy = locy[lvl * P:(lvl + 1) * P, :] * H - 0.5
        x0f = jnp.floor(ix)
        y0f = jnp.floor(iy)
        wx1 = ix - x0f
        wx0 = 1.0 - wx1
        wy1 = iy - y0f
        wy0 = 1.0 - wy1
        x0 = x0f.astype(jnp.int32)
        y0 = y0f.astype(jnp.int32)

        # All 4 bilinear corners: flattened index + masked effective weight,
        # computed once per level (hoisted out of the HW-chunk loop).
        corners = []
        for dy, dx, wgt in ((0, 0, wy0 * wx0), (0, 1, wy0 * wx1),
                            (1, 0, wy1 * wx0), (1, 1, wy1 * wx1)):
            xi = x0 + dx
            yi = y0 + dy
            inb = (xi >= 0) & (xi < W) & (yi >= 0) & (yi < H)
            flat = yi * W + xi                                   # (P, tq)
            w_eff = jnp.where(inb, wgt * a, 0.0)                 # zeros padding
            corners.append((flat, w_eff))

        # Chunk the HW axis so the (P, cs, tq) compare tensors stay bounded.
        for c0 in range(0, HW, hw_chunk):
            cs = min(hw_chunk, HW - c0)
            iota = jax.lax.broadcasted_iota(jnp.int32, (P, cs, tq), 1)
            gt = jnp.zeros((cs, tq), jnp.float32)
            for flat, w_eff in corners:
                hit = iota == (flat - c0)[:, None, :]            # (P, cs, tq)
                gt = gt + jnp.sum(
                    jnp.where(hit, w_eff[:, None, :], 0.0), axis=0)
            v_chunk = value[:, offset + c0:offset + c0 + cs]     # (c, cs)
            # (c, cs) @ (cs, tq): wide tq dim lands on MXU / store lanes.
            acc = acc + jnp.dot(v_chunk, gt,
                                preferred_element_type=jnp.float32)
        offset += HW

    out_ref[...] = acc.reshape(out_ref.shape).astype(out_ref.dtype)


def deform_core_pallas(value_t, attn, loc_x, loc_y, spatial_shapes, num_points,
                       *, q_tile=128, hw_chunk=512):
    """value_t: (bs, nh, c, Len_v); attn/loc_*: (bs, nh, L*P, Len_q)."""
    bs, nh, c, len_v = value_t.shape
    lp, len_q = attn.shape[2], attn.shape[3]

    tq = len_q if len_q <= q_tile else q_tile
    n_qt = pl.cdiv(len_q, tq)
    pad = n_qt * tq - len_q
    if pad:
        padw = ((0, 0), (0, 0), (0, 0), (0, pad))
        attn = jnp.pad(attn, padw)      # zero attn -> padded queries are inert
        loc_x = jnp.pad(loc_x, padw)
        loc_y = jnp.pad(loc_y, padw)

    v_idx = lambda b, h, q: (b, h, 0, 0)   # q-independent -> value stays resident
    q_idx = lambda b, h, q: (b, h, 0, q)

    kernel = functools.partial(
        deform_core_kernel,
        spatial_shapes=tuple(tuple(s) for s in spatial_shapes),
        num_points=num_points, hw_chunk=hw_chunk)

    out = pl.pallas_call(
        kernel,
        out_shape=jax.ShapeDtypeStruct((bs, nh, c, n_qt * tq), jnp.float32),
        grid=(bs, nh, n_qt),               # q innermost
        in_specs=[
            pl.BlockSpec((1, 1, c, len_v), v_idx),
            pl.BlockSpec((1, 1, lp, tq), q_idx),
            pl.BlockSpec((1, 1, lp, tq), q_idx),
            pl.BlockSpec((1, 1, lp, tq), q_idx),
        ],
        out_specs=pl.BlockSpec((1, 1, c, tq), q_idx),
        compiler_params=pltpu.CompilerParams(
            dimension_semantics=("parallel", "parallel", "parallel"),
            vmem_limit_bytes=32 * 1024 * 1024),
    )(value_t, attn, loc_x, loc_y)
    return out[..., :len_q] if pad else out


# ----------------------------------------------------------------------------- #
# Pure-JAX references (independent gather-based implementation)
# ----------------------------------------------------------------------------- #
def deform_core_reference(value_t, attn, loc_x, loc_y, spatial_shapes, num_points):
    P = num_points
    v = value_t.transpose(0, 1, 3, 2)       # (bs, nh, Len_v, c)
    a_all = attn.transpose(0, 1, 3, 2)      # (bs, nh, Len_q, L*P)
    lx = loc_x.transpose(0, 1, 3, 2)
    ly = loc_y.transpose(0, 1, 3, 2)
    bs, nh, _, c = v.shape
    len_q = a_all.shape[2]
    out = jnp.zeros((bs, nh, len_q, c), jnp.float32)
    offset = 0
    for lvl, (H, W) in enumerate(spatial_shapes):
        HW = H * W
        vl = v[:, :, offset:offset + HW, :]
        a = a_all[..., lvl * P:(lvl + 1) * P]
        ix = lx[..., lvl * P:(lvl + 1) * P] * W - 0.5
        iy = ly[..., lvl * P:(lvl + 1) * P] * H - 0.5
        x0 = jnp.floor(ix).astype(jnp.int32)
        y0 = jnp.floor(iy).astype(jnp.int32)
        wx1 = ix - x0
        wx0 = 1.0 - wx1
        wy1 = iy - y0
        wy0 = 1.0 - wy1
        for dy, dx, wgt in ((0, 0, wy0 * wx0), (0, 1, wy0 * wx1),
                            (1, 0, wy1 * wx0), (1, 1, wy1 * wx1)):
            xi = x0 + dx
            yi = y0 + dy
            inb = (xi >= 0) & (xi < W) & (yi >= 0) & (yi < H)
            flat = jnp.clip(yi * W + xi, 0, HW - 1)
            idx = flat.reshape(bs, nh, len_q * P)[..., None]
            gathered = jnp.take_along_axis(vl, idx, axis=2)
            gathered = gathered.reshape(bs, nh, len_q, P, c)
            w_eff = jnp.where(inb, wgt * a, 0.0)
            out = out + jnp.sum(gathered * w_eff[..., None], axis=3)
        offset += HW
    return out.transpose(0, 1, 3, 2)        # (bs, nh, c, Len_q)


def linear_reference(x, w, b):
    return x @ w + b.reshape(1, -1)


# ----------------------------------------------------------------------------- #
# MSDeformableAttention forward (glue: reshapes / transposes / softmax)
# ----------------------------------------------------------------------------- #
def ms_deformable_attention(query, reference_points, value, spatial_shapes, params,
                            *, num_heads, num_levels, num_points,
                            linear_fn, core_fn):
    bs, len_q, embed_dim = query.shape
    len_v = value.shape[1]
    head_dim = embed_dim // num_heads
    L, P = num_levels, num_points
    TP = num_heads * L * P

    # value projection -> (bs, nh, head_dim, Len_v)  (lane-dense on Len_v)
    v = linear_fn(value.reshape(bs * len_v, embed_dim),
                  params["vp_w"], params["vp_b"])
    value_t = v.reshape(bs, len_v, num_heads, head_dim).transpose(0, 2, 3, 1)
    # TODO(synk): optional value_mask multiply of the torch module is not applied
    # (mask=None path only).

    # fused sampling_offsets + attention_weights projection (one matmul,
    # single HBM read of the query activations)
    q2 = query.reshape(bs * len_q, embed_dim)
    saw_w = jnp.concatenate([params["so_w"], params["aw_w"]], axis=1)
    saw_b = jnp.concatenate([params["so_b"], params["aw_b"]], axis=0)
    saw = linear_fn(q2, saw_w, saw_b)
    so = saw[:, :2 * TP].reshape(bs, len_q, num_heads, L, P, 2)
    aw = saw[:, 2 * TP:].reshape(bs, len_q, num_heads, L * P)
    aw = jax.nn.softmax(aw, axis=-1)

    # sampling locations: ref + offset / (w, h)  (spatial shapes flipped)
    normalizer = jnp.array([[w, h] for (h, w) in spatial_shapes], jnp.float32)
    loc = reference_points.reshape(bs, len_q, 1, L, 1, 2) + \
        so / normalizer.reshape(1, 1, 1, L, 1, 2)     # (bs, Lq, nh, L, P, 2)

    # lane-dense core layouts: Len_q on the last (lane) axis
    # TODO(synk): these transposes are still XLA-side HBM passes; they could be
    # folded into the projection kernels' out index_maps.
    loc_x = loc[..., 0].transpose(0, 2, 3, 4, 1).reshape(bs, num_heads, L * P, len_q)
    loc_y = loc[..., 1].transpose(0, 2, 3, 4, 1).reshape(bs, num_heads, L * P, len_q)
    attn = aw.transpose(0, 2, 3, 1)                   # (bs, nh, L*P, Len_q)

    core_out = core_fn(value_t, attn, loc_x, loc_y, spatial_shapes, P)
    # (bs, nh, c, Len_q) -> (bs, Len_q, nh*c)  (head-major channels, as in torch)
    out = core_out.transpose(0, 3, 1, 2).reshape(bs, len_q, embed_dim)
    out = linear_fn(out.reshape(bs * len_q, embed_dim),
                    params["op_w"], params["op_b"]).reshape(bs, len_q, embed_dim)
    return out


# ----------------------------------------------------------------------------- #
# Deterministic parameter init (mirrors MSDeformableAttention._reset_parameters)
# ----------------------------------------------------------------------------- #
def init_params(key, embed_dim, num_heads, num_levels, num_points):
    total_points = num_heads * num_levels * num_points
    k1, k2 = jax.random.split(key)
    bound = math.sqrt(6.0 / (embed_dim + embed_dim))      # xavier_uniform

    # sampling_offsets: weight = 0, bias = directional grid init
    thetas = jnp.arange(num_heads, dtype=jnp.float32) * (2.0 * math.pi / num_heads)
    grid_init = jnp.stack([jnp.cos(thetas), jnp.sin(thetas)], axis=-1)   # (nh, 2)
    grid_init = grid_init / jnp.max(jnp.abs(grid_init), axis=-1, keepdims=True)
    grid_init = jnp.tile(grid_init.reshape(num_heads, 1, 1, 2),
                         (1, num_levels, num_points, 1))
    scaling = jnp.arange(1, num_points + 1, dtype=jnp.float32).reshape(1, 1, -1, 1)
    so_b = (grid_init * scaling).reshape(-1)

    return {
        "so_w": jnp.zeros((embed_dim, total_points * 2), jnp.float32),
        "so_b": so_b,
        "aw_w": jnp.zeros((embed_dim, total_points), jnp.float32),
        "aw_b": jnp.zeros((total_points,), jnp.float32),
        "vp_w": jax.random.uniform(k1, (embed_dim, embed_dim), jnp.float32,
                                   -bound, bound),
        "vp_b": jnp.zeros((embed_dim,), jnp.float32),
        "op_w": jax.random.uniform(k2, (embed_dim, embed_dim), jnp.float32,
                                   -bound, bound),
        "op_b": jnp.zeros((embed_dim,), jnp.float32),
    }


# ----------------------------------------------------------------------------- #
if __name__ == "__main__":
    # small config consistent with the module; Len_q > q_tile exercises q-tiling
    embed_dim, num_heads, num_levels, num_points = 32, 4, 2, 2
    spatial_shapes = ((8, 8), (4, 4))                      # (h, w) per level
    bs, len_q = 2, 256
    len_v = sum(h * w for h, w in spatial_shapes)          # 80

    key = jax.random.PRNGKey(0)
    kq, kv, kr, kp = jax.random.split(key, 4)
    query = jax.random.normal(kq, (bs, len_q, embed_dim), jnp.float32)
    value = jax.random.normal(kv, (bs, len_v, embed_dim), jnp.float32)
    reference_points = jax.random.uniform(kr, (bs, len_q, num_levels, 2),
                                          jnp.float32)
    params = init_params(kp, embed_dim, num_heads, num_levels, num_points)

    common = dict(num_heads=num_heads, num_levels=num_levels, num_points=num_points)

    out = ms_deformable_attention(
        query, reference_points, value, spatial_shapes, params,
        linear_fn=linear_pallas, core_fn=deform_core_pallas, **common)
    out = jax.block_until_ready(out)

    ref = ms_deformable_attention(
        query, reference_points, value, spatial_shapes, params,
        linear_fn=linear_reference, core_fn=deform_core_reference, **common)
    ref = jax.block_until_ready(ref)

    assert out.shape == (bs, len_q, embed_dim)
    max_err = float(jnp.max(jnp.abs(out - ref)))
    assert max_err < 1e-4, f"mismatch vs reference: {max_err}"
    print("KERNEL_OK")
</pallas_src>

<mosaic_0001>
module attributes {stable_mosaic.version = 11 : i64} {
  func.func @linear_kernel(%arg0: i32, %arg1: memref<160x32xf32, #tpu.memory_space<vmem>>, %arg2: memref<32x32xf32, #tpu.memory_space<vmem>>, %arg3: memref<1x32xf32, #tpu.memory_space<vmem>>, %arg4: memref<160x32xf32, #tpu.memory_space<vmem>>) attributes {dimension_semantics = [#tpu.dimension_semantics<parallel>], iteration_bounds = array<i64: 1>, scalar_prefetch = 0 : i64, scratch_operands = 0 : i64, tpu.core_type = #tpu.core_type<tc>, window_params = [{transform_indices = @transform_0, window_bounds = array<i64: 160, 32>}, {pipeline_mode = #tpu.pipeline_mode<synchronous>, transform_indices = @transform_1, window_bounds = array<i64: 32, 32>}, {pipeline_mode = #tpu.pipeline_mode<synchronous>, transform_indices = @transform_2, window_bounds = array<i64: 1, 32>}, {transform_indices = @transform_3, window_bounds = array<i64: 160, 32>}]} {
    %c0 = arith.constant 0 : index
    %c0_0 = arith.constant 0 : index
    %0 = vector.load %arg1[%c0, %c0_0] : memref<160x32xf32, #tpu.memory_space<vmem>>, vector<160x32xf32>
    %c0_1 = arith.constant 0 : index
    %c0_2 = arith.constant 0 : index
    %1 = vector.load %arg2[%c0_1, %c0_2] : memref<32x32xf32, #tpu.memory_space<vmem>>, vector<32x32xf32>
    %cst = arith.constant dense<0.000000e+00> : vector<160x32xf32>
    %2 = tpu.matmul %0, %1, %cst {dimension_numbers = #tpu.dot_dimension_numbers<[1], [0], [0], [1], [0, 0, 1, 1], [], []>} : vector<160x32xf32>, vector<32x32xf32>, vector<160x32xf32> -> vector<160x32xf32>
    %c0_3 = arith.constant 0 : index
    %c0_4 = arith.constant 0 : index
    %3 = vector.load %arg3[%c0_3, %c0_4] : memref<1x32xf32, #tpu.memory_space<vmem>>, vector<1x32xf32>
    %4 = vector.broadcast %3 : vector<1x32xf32> to vector<160x32xf32>
    %5 = arith.addf %2, %4 : vector<160x32xf32>
    %c0_5 = arith.constant 0 : index
    %c0_6 = arith.constant 0 : index
    %6 = vector.load %arg4[%c0_5, %c0_6] : memref<160x32xf32, #tpu.memory_space<vmem>>, vector<160x32xf32>
    tpu.vector_store %arg4[%c0_5, %c0_6], %5 {strides = array<i32>} : memref<160x32xf32, #tpu.memory_space<vmem>>, vector<160x32xf32>,
    return
  }
  func.func @transform_0(%arg0: i32) -> (i32, i32) {
    %c0_i32 = arith.constant 0 : i32
    %c0_i32_0 = arith.constant 0 : i32
    return %arg0, %c0_i32 : i32, i32
  }
  func.func @transform_1(%arg0: i32) -> (i32, i32) {
    %c0_i32 = arith.constant 0 : i32
    %c0_i32_0 = arith.constant 0 : i32
    %c0_i32_1 = arith.constant 0 : i32
    return %c0_i32, %c0_i32_0 : i32, i32
  }
  func.func @transform_2(%arg0: i32) -> (i32, i32) {
    %c0_i32 = arith.constant 0 : i32
    %c0_i32_0 = arith.constant 0 : i32
    %c0_i32_1 = arith.constant 0 : i32
    return %c0_i32, %c0_i32_0 : i32, i32
  }
  func.func @transform_3(%arg0: i32) -> (i32, i32) {
    %c0_i32 = arith.constant 0 : i32
    %c0_i32_0 = arith.constant 0 : i32
    return %arg0, %c0_i32 : i32, i32
  }
}

</mosaic_0001>

<llo_original>
// kernel: tpu_custom_call.1
$region0: #{tpu_custom_call.1}
  #allocation0 [shape = 'u32[]', space=smem, size = 0x4, offset = 0x4, fixed_abs, tag = 'smem constant byte address 0x4 - core index']
  #allocation1 [shape = 'u32[72,128]{1,0:T(1,128)}', space=vmem, size = 0x9000, scoped, tag = 'internal scratch']
  %s0 = inlined_call_operand.vmem [shape: f32[160,32], index: 0, kind: input, shape index: {}]
  %s1 = inlined_call_operand.vmem [shape: f32[32,32], index: 1, kind: input, shape index: {}]
  %s2 = inlined_call_operand.vmem [shape: f32[1,32], index: 2, kind: input, shape index: {}]
  %s3 = inlined_call_operand.vmem [shape: f32[160,32], index: 3, kind: output, shape index: {}]
  %s4 = sld [smem:[#allocation0]]
  $region22: #{tpu_custom_call.1} parent=0
    _
  %s6 = ssub.s32 1, %s4
  %s7 = scalar_select 0, %s6, %s4
  // Predicated region
  $region2: #{tpu_custom_call.1} parent=0 // pred_check
    _
  $region3: #{tpu_custom_call.1} parent=0 // pred_check_branch
    %9 = sbr.rel (0) target = $region5
  $region4: #{tpu_custom_call.1} parent=0 // pred_region
    _
  $region5: #{tpu_custom_call.1} parent=0 // pred_fallthru
    _
  // Predicated region
  $region6: #{tpu_custom_call.1} parent=0 // pred_check
    _
  $region7: #{tpu_custom_call.1} parent=0 // pred_check_branch
    %11 = sbr.rel (0) target = $region9
  $region8: #{tpu_custom_call.1} parent=0 // pred_region
    _
  $region9: #{tpu_custom_call.1} parent=0 // pred_fallthru
    _
  // Predicated region
  $region10: #{tpu_custom_call.1} parent=0 // pred_check
    _
  $region11: #{tpu_custom_call.1} parent=0 // pred_check_branch
    %13 = sbr.rel (0) target = $region13
  $region12: #{tpu_custom_call.1} parent=0 // pred_region
    _
  $region13: #{tpu_custom_call.1} parent=0 // pred_fallthru
    _
  %v14 = vld [vmem:[%s0] sm:$0xff]
  %v15 = vld [vmem:[%s0 + $0x8] sm:$0xff]
  %v16 = vld [vmem:[%s0 + $0x10] sm:$0xff]
  %v17 = vld [vmem:[%s0 + $0x18] sm:$0xff]
  %v18 = vld [vmem:[%s0 + $0x20] sm:$0xff]
  %v19 = vld [vmem:[%s0 + $0x28] sm:$0xff]
  %v20 = vld [vmem:[%s0 + $0x30] sm:$0xff]
  %v21 = vld [vmem:[%s0 + $0x38] sm:$0xff]
  %v22 = vld [vmem:[%s0 + $0x40] sm:$0xff]
  %v23 = vld [vmem:[%s0 + $0x48] sm:$0xff]
  %v24 = vld [vmem:[%s0 + $0x50] sm:$0xff]
  %v25 = vld [vmem:[%s0 + $0x58] sm:$0xff]
  %v26 = vld [vmem:[%s0 + $0x60] sm:$0xff]
  %v27 = vld [vmem:[%s0 + $0x68] sm:$0xff]
  %v28 = vld [vmem:[%s0 + $0x70] sm:$0xff]
  %v29 = vld [vmem:[%s0 + $0x78] sm:$0xff]
  %v30 = vld [vmem:[%s0 + $0x80] sm:$0xff]
  %v31 = vld [vmem:[%s0 + $0x88] sm:$0xff]
  %v32 = vld [vmem:[%s0 + $0x90] sm:$0xff]
  %v33 = vld [vmem:[%s0 + $0x98] sm:$0xff]
  %v34 = vld [vmem:[%s1] sm:$0xff]
  %v35 = vld [vmem:[%s1 + $0x8] sm:$0xff]
  %v36 = vld [vmem:[%s1 + $0x10] sm:$0xff]
  %v37 = vld [vmem:[%s1 + $0x18] sm:$0xff]
  %v38 = vld [vmem:[%s2] sm:$0x1]
  %v40 = vperm.slane %v38, 0
  %vm42 = vcmask 261120
  %v44 = vsel %vm42, %v14, 0
  %v47 = vsel %vm42, %v15, 0
  %v50 = vsel %vm42, %v16, 0
  %v53 = vsel %vm42, %v17, 0
  %v56 = vsel %vm42, %v18, 0
  %v59 = vsel %vm42, %v19, 0
  %v62 = vsel %vm42, %v20, 0
  %v65 = vsel %vm42, %v21, 0
  %v68 = vsel %vm42, %v22, 0
  %v71 = vsel %vm42, %v23, 0
  %v74 = vsel %vm42, %v24, 0
  %v77 = vsel %vm42, %v25, 0
  %v80 = vsel %vm42, %v26, 0
  %v83 = vsel %vm42, %v27, 0
  %v86 = vsel %vm42, %v28, 0
  %v89 = vsel %vm42, %v29, 0
  %v92 = vsel %vm42, %v30, 0
  %v95 = vsel %vm42, %v31, 0
  %v98 = vsel %vm42, %v32, 0
  %v101 = vsel %vm42, %v33, 0
  %103 = vmatpush.msra.mxu0 0.0
  %104 = vmatpush.msra.mxu0 0.0
  %105 = vmatpush.msra.mxu0 0.0
  %106 = vmatpush.msra.mxu0 0.0
  %107 = vmatpush.msra.mxu0 0.0
  %108 = vmatpush.msra.mxu0 0.0
  %109 = vmatpush.msra.mxu0 0.0
  %110 = vmatpush.msra.mxu0 0.0
  %111 = vmatpush.msra.mxu0 0.0
  %112 = vmatpush.msra.mxu0 0.0
  %113 = vmatpush.msra.mxu0 0.0
  %114 = vmatpush.msra.mxu0 0.0
  %115 = vmatpush.msra.mxu0 %v37
  %116 = vmatpush.msra.mxu0 %v36
  %117 = vmatpush.msra.mxu0 %v35
  %118 = vmatpush.msra.mxu0 %v34
  %119 = vmatmul.f32.gmra.mxu0 %v44
  %v120 = vpop.f32.mrf.mxu0
  %v121 = vadd.f32 %v40, %v120
  %122 = vmatmul.f32.gmra.mxu0 %v47
  %v123 = vpop.f32.mrf.mxu0
  %v124 = vadd.f32 %v40, %v123
  %125 = vmatmul.f32.gmra.mxu0 %v50
  %v126 = vpop.f32.mrf.mxu0
  %v127 = vadd.f32 %v40, %v126
  %128 = vmatmul.f32.gmra.mxu0 %v53
  %v129 = vpop.f32.mrf.mxu0
  %v130 = vadd.f32 %v40, %v129
  %131 = vmatmul.f32.gmra.mxu0 %v56
  %v132 = vpop.f32.mrf.mxu0
  %v133 = vadd.f32 %v40, %v132
  %134 = vmatmul.f32.gmra.mxu0 %v59
  %v135 = vpop.f32.mrf.mxu0
  %v136 = vadd.f32 %v40, %v135
  %137 = vmatmul.f32.gmra.mxu0 %v62
  %v138 = vpop.f32.mrf.mxu0
  %v139 = vadd.f32 %v40, %v138
  %140 = vmatmul.f32.gmra.mxu0 %v65
  %v141 = vpop.f32.mrf.mxu0
  %v142 = vadd.f32 %v40, %v141
  %143 = vmatmul.f32.gmra.mxu0 %v68
  %v144 = vpop.f32.mrf.mxu0
  %v145 = vadd.f32 %v40, %v144
  %146 = vmatmul.f32.gmra.mxu0 %v71
  %v147 = vpop.f32.mrf.mxu0
  %v148 = vadd.f32 %v40, %v147
  %149 = vmatmul.f32.gmra.mxu0 %v74
  %v150 = vpop.f32.mrf.mxu0
  %v151 = vadd.f32 %v40, %v150
  %152 = vmatmul.f32.gmra.mxu0 %v77
  %v153 = vpop.f32.mrf.mxu0
  %v154 = vadd.f32 %v40, %v153
  %155 = vmatmul.f32.gmra.mxu0 %v80
  %v156 = vpop.f32.mrf.mxu0
  %v157 = vadd.f32 %v40, %v156
  %158 = vmatmul.f32.gmra.mxu0 %v83
  %v159 = vpop.f32.mrf.mxu0
  %v160 = vadd.f32 %v40, %v159
  %161 = vmatmul.f32.gmra.mxu0 %v86
  %v162 = vpop.f32.mrf.mxu0
  %v163 = vadd.f32 %v40, %v162
  %164 = vmatmul.f32.gmra.mxu0 %v89
  %v165 = vpop.f32.mrf.mxu0
  %v166 = vadd.f32 %v40, %v165
  %167 = vmatmul.f32.gmra.mxu0 %v92
  %v168 = vpop.f32.mrf.mxu0
  %v169 = vadd.f32 %v40, %v168
  %170 = vmatmul.f32.gmra.mxu0 %v95
  %v171 = vpop.f32.mrf.mxu0
  %v172 = vadd.f32 %v40, %v171
  %173 = vmatmul.f32.gmra.mxu0 %v98
  %v174 = vpop.f32.mrf.mxu0
  %v175 = vadd.f32 %v40, %v174
  %176 = vmatmul.f32.gmra.mxu0 %v101
  %v177 = vpop.f32.mrf.mxu0
  %v178 = vadd.f32 %v40, %v177
  %179 = vdwg.mxu0
  %180 = vst.msk [vmem:[%s3] sm:$0xff] %vm42, %v121
  %181 = vst.msk [vmem:[%s3 + $0x8] sm:$0xff] %vm42, %v124
  %182 = vst.msk [vmem:[%s3 + $0x10] sm:$0xff] %vm42, %v127
  %183 = vst.msk [vmem:[%s3 + $0x18] sm:$0xff] %vm42, %v130
  %184 = vst.msk [vmem:[%s3 + $0x20] sm:$0xff] %vm42, %v133
  %185 = vst.msk [vmem:[%s3 + $0x28] sm:$0xff] %vm42, %v136
  %186 = vst.msk [vmem:[%s3 + $0x30] sm:$0xff] %vm42, %v139
  %187 = vst.msk [vmem:[%s3 + $0x38] sm:$0xff] %vm42, %v142
  %188 = vst.msk [vmem:[%s3 + $0x40] sm:$0xff] %vm42, %v145
  %189 = vst.msk [vmem:[%s3 + $0x48] sm:$0xff] %vm42, %v148
  %190 = vst.msk [vmem:[%s3 + $0x50] sm:$0xff] %vm42, %v151
  %191 = vst.msk [vmem:[%s3 + $0x58] sm:$0xff] %vm42, %v154
  %192 = vst.msk [vmem:[%s3 + $0x60] sm:$0xff] %vm42, %v157
  %193 = vst.msk [vmem:[%s3 + $0x68] sm:$0xff] %vm42, %v160
  %194 = vst.msk [vmem:[%s3 + $0x70] sm:$0xff] %vm42, %v163
  %195 = vst.msk [vmem:[%s3 + $0x78] sm:$0xff] %vm42, %v166
  %196 = vst.msk [vmem:[%s3 + $0x80] sm:$0xff] %vm42, %v169
  %197 = vst.msk [vmem:[%s3 + $0x88] sm:$0xff] %vm42, %v172
  %198 = vst.msk [vmem:[%s3 + $0x90] sm:$0xff] %vm42, %v175
  %199 = vst.msk [vmem:[%s3 + $0x98] sm:$0xff] %vm42, %v178
  // Predicated region
  $region14: #{tpu_custom_call.1} parent=0 // pred_check
    _
  $region15: #{tpu_custom_call.1} parent=0 // pred_check_branch
    %201 = sbr.rel (0) target = $region17
  $region16: #{tpu_custom_call.1} parent=0 // pred_region
    _
  $region17: #{tpu_custom_call.1} parent=0 // pred_fallthru
    _
  // Predicated region
  $region18: #{tpu_custom_call.1} parent=0 // pred_check
    _
  $region19: #{tpu_custom_call.1} parent=0 // pred_check_branch
    %203 = sbr.rel (0) target = $region21
  $region20: #{tpu_custom_call.1} parent=0 // pred_region
    _
  $region21: #{tpu_custom_call.1} parent=0 // pred_fallthru
    _

</llo_original>
